<compile_context>
chip_gen: v7x
topology: tpu7x:2x2x1
jax: 0.10.0
libtpu: 0.0.40
codegen_flags: <defaults>
</compile_context>

<pallas_src>
import jax
import jax.numpy as jnp
from jax import lax
from jax.experimental import pallas as pl
from jax.experimental.pallas import tpu as pltpu
import numpy as np

EPSILON = 1e-12

# ---------------------------------------------------------------------------
# Problem sizes (small, consistent with the module's forward)
# ---------------------------------------------------------------------------
B = 2            # batch
C = 64           # num_features (backbone output channels; 768 for inception, shrunk here)
H = W = 8        # spatial size of the feature maps
HW = H * W
M = 8            # number of attention maps
NUM_CLASSES = 10
MC = M * C       # BAP feature-matrix width
BHW = B * HW     # 128 -> exactly one vreg lane width


def _wsdan_kernel(f_ref, ft_ref, wc_ref, bc_ref, wfc_ref, p_ref, fm_ref, amap_ref):
    """Single invocation: whole batch at once (no grid).

    f_ref   : (C, B*HW)          features, channel-major -> conv matmul is lane-dense
    ft_ref  : (B*HW, C)          features, position-major -> BAP matmul needs no transpose
    wc_ref  : (M, C)             1x1 conv weight with BN scale folded in
    bc_ref  : (M, 1)             fused BN bias
    wfc_ref : (M, C, NUM_CLASSES) fc weight * 100 (unpadded)
    p_ref   : (B, NUM_CLASSES)   logits
    fm_ref  : (B, M, C)          BAP feature matrix (flattened to (B, M*C) in the wrapper)
    amap_ref: (1, B*HW)          mean attention map (eval branch), lane-dense
    """
    f = f_ref[...]                      # (C, BHW)
    wc = wc_ref[...]                    # (M, C)
    bc = bc_ref[...]                    # (M, 1)

    # BasicConv2d: 1x1 conv (channel matmul) + folded BN + ReLU — one (M,C)@(C,BHW) matmul
    attn = jnp.dot(wc, f, preferred_element_type=jnp.float32) + bc   # (M, BHW)
    attn = jnp.maximum(attn, 0.0)

    # eval-mode attention map: mean over M -> lane-dense (1, BHW)
    amap_ref[...] = jnp.mean(attn, axis=0, keepdims=True)

    # BAP (GAP): per sample  fm[b] = (A_b @ F_b) / HW, then signed sqrt + L2 normalize.
    f_t = ft_ref[...]                   # (BHW, C)
    inv_hw = 1.0 / float(HW)
    for b in range(B):                  # static unroll; B is a compile-time constant
        lo = b * HW
        a_b = attn[:, lo:lo + HW]       # (M, HW)
        raw = jnp.dot(a_b, f_t[lo:lo + HW, :],
                      preferred_element_type=jnp.float32) * inv_hw   # (M, C)
        # signed sqrt: raw * rsqrt(|raw|+eps) == sign(raw)*sqrt(|raw|+eps) up to O(sqrt(eps))
        fs = raw * lax.rsqrt(jnp.abs(raw) + EPSILON)
        # F.normalize(dim=-1, eps=1e-12): x / max(||x||, 1e-12) == x * rsqrt(max(ss, 1e-24))
        inv_norm = lax.rsqrt(jnp.maximum(jnp.sum(fs * fs), 1e-24))
        fm_ref[b] = fs * inv_norm       # write each (M, C) tile straight to the output

    # classifier: p[b,k] = sum_{m,c} fm[b,m,c] * wfc[m,c,k]   (fc pre-scaled by 100)
    # Loop over m keeps every matmul (B,C)@(C,K); iteration 0 initializes the accumulator.
    fm = fm_ref[...]                    # (B, M, C) — cheap VMEM read-back of just-stored data
    wfc = wfc_ref[...]                  # (M, C, NUM_CLASSES)
    p = jnp.dot(fm[:, 0, :], wfc[0], preferred_element_type=jnp.float32)
    for m in range(1, M):               # static unroll, M = 8
        p = p + jnp.dot(fm[:, m, :], wfc[m], preferred_element_type=jnp.float32)
    p_ref[...] = p


def wsdan_forward(feature_maps, conv_w, bn_gamma, bn_beta, bn_mean, bn_var, fc_w):
    """feature_maps: (B, C, H, W) float32 (NCHW, as produced by the backbone)."""
    x = feature_maps.reshape(B, C, HW).astype(jnp.float32)
    # Both layouts are produced in HBM (free): channel-major for the conv matmul,
    # position-major for the BAP matmul (avoids in-kernel transposes).
    f_lanes = jnp.transpose(x, (1, 0, 2)).reshape(C, BHW)      # (C, B*HW)
    f_t = jnp.transpose(x, (0, 2, 1)).reshape(BHW, C)          # (B*HW, C)

    # Fold BatchNorm (eval mode, eps=0.001) into the 1x1 conv weight / bias (glue, plain JAX).
    scale = bn_gamma / jnp.sqrt(bn_var + 1e-3)                 # (M,)
    wc_eff = conv_w.reshape(M, C) * scale[:, None]             # (M, C)
    bc_eff = (bn_beta - bn_mean * scale)[:, None]              # (M, 1)

    # Fold the *100.0 classifier scale into fc and reshape to (M, C, K). No class padding.
    wfc_eff = (fc_w * 100.0).reshape(NUM_CLASSES, M, C).transpose(1, 2, 0)   # (M, C, K)

    vmem = pltpu.MemorySpace.VMEM
    p, fm, amap = pl.pallas_call(
        _wsdan_kernel,
        out_shape=(
            jax.ShapeDtypeStruct((B, NUM_CLASSES), jnp.float32),
            jax.ShapeDtypeStruct((B, M, C), jnp.float32),
            jax.ShapeDtypeStruct((1, BHW), jnp.float32),
        ),
        in_specs=[pl.BlockSpec(memory_space=vmem)] * 5,
        out_specs=(
            pl.BlockSpec(memory_space=vmem),
            pl.BlockSpec(memory_space=vmem),
            pl.BlockSpec(memory_space=vmem),
        ),
    )(f_lanes, f_t, wc_eff, bc_eff, wfc_eff)

    feature_matrix = fm.reshape(B, MC)                 # flatten in HBM, not in-kernel
    attention_map = amap.reshape(B, HW).reshape(B, 1, H, W)
    return p, feature_matrix, attention_map


def wsdan_reference(feature_maps, conv_w, bn_gamma, bn_beta, bn_mean, bn_var, fc_w):
    """Pure-JAX reference mirroring the PyTorch forward (eval mode)."""
    x = feature_maps.astype(jnp.float32)
    a = jnp.einsum('mc,bchw->bmhw', conv_w.reshape(M, C), x)
    scale = bn_gamma / jnp.sqrt(bn_var + 1e-3)
    a = a * scale[None, :, None, None] + (bn_beta - bn_mean * scale)[None, :, None, None]
    a = jnp.maximum(a, 0.0)
    fm = jnp.einsum('imjk,injk->imn', a, x) / float(H * W)
    fm = fm.reshape(B, -1)
    fm = jnp.sign(fm) * jnp.sqrt(jnp.abs(fm) + EPSILON)
    fm = fm / jnp.maximum(jnp.linalg.norm(fm, axis=-1, keepdims=True), 1e-12)
    p = (fm * 100.0) @ fc_w.T
    amap = jnp.mean(a, axis=1, keepdims=True)
    return p, fm, amap


if __name__ == "__main__":
    key = jax.random.PRNGKey(0)
    k_f, k_w, k_g, k_b, k_m, k_v, k_fc = jax.random.split(key, 7)

    feature_maps = jax.random.normal(k_f, (B, C, H, W), dtype=jnp.float32)
    conv_w = jax.random.normal(k_w, (M, C, 1, 1), dtype=jnp.float32) * 0.1
    bn_gamma = 1.0 + 0.1 * jax.random.normal(k_g, (M,), dtype=jnp.float32)
    bn_beta = 0.1 * jax.random.normal(k_b, (M,), dtype=jnp.float32)
    bn_mean = 0.1 * jax.random.normal(k_m, (M,), dtype=jnp.float32)
    bn_var = jnp.abs(1.0 + 0.1 * jax.random.normal(k_v, (M,), dtype=jnp.float32))
    fc_w = jax.random.normal(k_fc, (NUM_CLASSES, MC), dtype=jnp.float32) * 0.05

    p, fm, amap = wsdan_forward(feature_maps, conv_w, bn_gamma, bn_beta,
                                bn_mean, bn_var, fc_w)
    jax.block_until_ready((p, fm, amap))

    p_ref, fm_ref, amap_ref = wsdan_reference(feature_maps, conv_w, bn_gamma, bn_beta,
                                              bn_mean, bn_var, fc_w)
    np.testing.assert_allclose(np.asarray(p), np.asarray(p_ref), rtol=1e-4, atol=1e-4)
    np.testing.assert_allclose(np.asarray(fm), np.asarray(fm_ref), rtol=1e-4, atol=1e-4)
    np.testing.assert_allclose(np.asarray(amap), np.asarray(amap_ref), rtol=1e-4, atol=1e-4)

    assert p.shape == (B, NUM_CLASSES)
    assert fm.shape == (B, MC)
    assert amap.shape == (B, 1, H, W)
    print("KERNEL_OK")
</pallas_src>

<mosaic_0001>
module attributes {stable_mosaic.version = 11 : i64} {
  func.func @_wsdan_kernel(%arg0: memref<64x128xf32, #tpu.memory_space<vmem>>, %arg1: memref<128x64xf32, #tpu.memory_space<vmem>>, %arg2: memref<8x64xf32, #tpu.memory_space<vmem>>, %arg3: memref<8x1xf32, #tpu.memory_space<vmem>>, %arg4: memref<8x64x10xf32, #tpu.memory_space<vmem>>, %arg5: memref<2x10xf32, #tpu.memory_space<vmem>>, %arg6: memref<2x8x64xf32, #tpu.memory_space<vmem>>, %arg7: memref<1x128xf32, #tpu.memory_space<vmem>>) attributes {dimension_semantics = [], scalar_prefetch = 0 : i64, scratch_operands = 0 : i64, tpu.core_type = #tpu.core_type<tc>} {
    %c0 = arith.constant 0 : index
    %c0_0 = arith.constant 0 : index
    %0 = vector.load %arg0[%c0, %c0_0] : memref<64x128xf32, #tpu.memory_space<vmem>>, vector<64x128xf32>
    %c0_1 = arith.constant 0 : index
    %c0_2 = arith.constant 0 : index
    %1 = vector.load %arg2[%c0_1, %c0_2] : memref<8x64xf32, #tpu.memory_space<vmem>>, vector<8x64xf32>
    %c0_3 = arith.constant 0 : index
    %c0_4 = arith.constant 0 : index
    %2 = vector.load %arg3[%c0_3, %c0_4] : memref<8x1xf32, #tpu.memory_space<vmem>>, vector<8x1xf32>
    %cst = arith.constant dense<0.000000e+00> : vector<8x128xf32>
    %3 = tpu.matmul %1, %0, %cst {dimension_numbers = #tpu.dot_dimension_numbers<[1], [0], [0], [1], [0, 0, 1, 1], [], []>} : vector<8x64xf32>, vector<64x128xf32>, vector<8x128xf32> -> vector<8x128xf32>
    %4 = vector.broadcast %2 : vector<8x1xf32> to vector<8x128xf32>
    %5 = arith.addf %3, %4 : vector<8x128xf32>
    %cst_5 = arith.constant 0.000000e+00 : f32
    %6 = vector.broadcast %cst_5 : f32 to vector<8x128xf32>
    %7 = arith.maximumf %5, %6 : vector<8x128xf32>
    %cst_6 = arith.constant dense<0.000000e+00> : vector<128xf32>
    %8 = vector.multi_reduction <add>, %7, %cst_6 [0] : vector<8x128xf32> to vector<128xf32>
    %9 = vector.shape_cast %8 : vector<128xf32> to vector<1x128xf32>
    %cst_7 = arith.constant 8.000000e+00 : f32
    %10 = vector.broadcast %cst_7 : f32 to vector<1x128xf32>
    %11 = arith.divf %9, %10 : vector<1x128xf32>
    %c0_8 = arith.constant 0 : index
    %c0_9 = arith.constant 0 : index
    %12 = vector.load %arg7[%c0_8, %c0_9] : memref<1x128xf32, #tpu.memory_space<vmem>>, vector<1x128xf32>
    tpu.vector_store %arg7[%c0_8, %c0_9], %11 {strides = array<i32>} : memref<1x128xf32, #tpu.memory_space<vmem>>, vector<1x128xf32>,
    %c0_10 = arith.constant 0 : index
    %c0_11 = arith.constant 0 : index
    %13 = vector.load %arg1[%c0_10, %c0_11] : memref<128x64xf32, #tpu.memory_space<vmem>>, vector<128x64xf32>
    %14 = vector.extract_strided_slice %7 {offsets = [0, 0], sizes = [8, 64], strides = [1, 1]} : vector<8x128xf32> to vector<8x64xf32>
    %15 = vector.extract_strided_slice %13 {offsets = [0, 0], sizes = [64, 64], strides = [1, 1]} : vector<128x64xf32> to vector<64x64xf32>
    %cst_12 = arith.constant dense<0.000000e+00> : vector<8x64xf32>
    %16 = tpu.matmul %14, %15, %cst_12 {dimension_numbers = #tpu.dot_dimension_numbers<[1], [0], [0], [1], [0, 0, 1, 1], [], []>} : vector<8x64xf32>, vector<64x64xf32>, vector<8x64xf32> -> vector<8x64xf32>
    %cst_13 = arith.constant 1.562500e-02 : f32
    %17 = vector.broadcast %cst_13 : f32 to vector<8x64xf32>
    %18 = arith.mulf %16, %17 : vector<8x64xf32>
    %19 = math.absf %18 : vector<8x64xf32>
    %cst_14 = arith.constant 9.99999996E-13 : f32
    %20 = vector.broadcast %cst_14 : f32 to vector<8x64xf32>
    %21 = arith.addf %19, %20 : vector<8x64xf32>
    %22 = math.rsqrt %21 : vector<8x64xf32>
    %23 = arith.mulf %18, %22 : vector<8x64xf32>
    %24 = arith.mulf %23, %23 : vector<8x64xf32>
    %25 = vector.shape_cast %24 : vector<8x64xf32> to vector<1x8x64xf32>
    %cst_15 = arith.constant dense<0.000000e+00> : vector<1xf32>
    %26 = vector.multi_reduction <add>, %25, %cst_15 [1, 2] : vector<1x8x64xf32> to vector<1xf32>
    %27 = vector.shape_cast %26 : vector<1xf32> to vector<1x1x1xf32>
    %28 = vector.extract %27[0, 0, 0] : f32 from vector<1x1x1xf32>
    %cst_16 = arith.constant 1.000000e-24 : f32
    %29 = arith.maximumf %28, %cst_16 : f32
    %30 = math.rsqrt %29 : f32
    %31 = vector.broadcast %30 : f32 to vector<8x64xf32>
    %32 = arith.mulf %23, %31 : vector<8x64xf32>
    %c0_17 = arith.constant 0 : index
    %c0_18 = arith.constant 0 : index
    %c0_19 = arith.constant 0 : index
    %33 = vector.load %arg6[%c0_17, %c0_18, %c0_19] : memref<2x8x64xf32, #tpu.memory_space<vmem>>, vector<1x8x64xf32>
    %34 = vector.shape_cast %33 : vector<1x8x64xf32> to vector<8x64xf32>
    %35 = vector.shape_cast %32 : vector<8x64xf32> to vector<1x8x64xf32>
    tpu.vector_store %arg6[%c0_17, %c0_18, %c0_19], %35 {strides = array<i32>} : memref<2x8x64xf32, #tpu.memory_space<vmem>>, vector<1x8x64xf32>,
    %36 = vector.extract_strided_slice %7 {offsets = [0, 64], sizes = [8, 64], strides = [1, 1]} : vector<8x128xf32> to vector<8x64xf32>
    %37 = vector.extract_strided_slice %13 {offsets = [64, 0], sizes = [64, 64], strides = [1, 1]} : vector<128x64xf32> to vector<64x64xf32>
    %cst_20 = arith.constant dense<0.000000e+00> : vector<8x64xf32>
    %38 = tpu.matmul %36, %37, %cst_20 {dimension_numbers = #tpu.dot_dimension_numbers<[1], [0], [0], [1], [0, 0, 1, 1], [], []>} : vector<8x64xf32>, vector<64x64xf32>, vector<8x64xf32> -> vector<8x64xf32>
    %cst_21 = arith.constant 1.562500e-02 : f32
    %39 = vector.broadcast %cst_21 : f32 to vector<8x64xf32>
    %40 = arith.mulf %38, %39 : vector<8x64xf32>
    %41 = math.absf %40 : vector<8x64xf32>
    %cst_22 = arith.constant 9.99999996E-13 : f32
    %42 = vector.broadcast %cst_22 : f32 to vector<8x64xf32>
    %43 = arith.addf %41, %42 : vector<8x64xf32>
    %44 = math.rsqrt %43 : vector<8x64xf32>
    %45 = arith.mulf %40, %44 : vector<8x64xf32>
    %46 = arith.mulf %45, %45 : vector<8x64xf32>
    %47 = vector.shape_cast %46 : vector<8x64xf32> to vector<1x8x64xf32>
    %cst_23 = arith.constant dense<0.000000e+00> : vector<1xf32>
    %48 = vector.multi_reduction <add>, %47, %cst_23 [1, 2] : vector<1x8x64xf32> to vector<1xf32>
    %49 = vector.shape_cast %48 : vector<1xf32> to vector<1x1x1xf32>
    %50 = vector.extract %49[0, 0, 0] : f32 from vector<1x1x1xf32>
    %cst_24 = arith.constant 1.000000e-24 : f32
    %51 = arith.maximumf %50, %cst_24 : f32
    %52 = math.rsqrt %51 : f32
    %53 = vector.broadcast %52 : f32 to vector<8x64xf32>
    %54 = arith.mulf %45, %53 : vector<8x64xf32>
    %c1 = arith.constant 1 : index
    %c0_25 = arith.constant 0 : index
    %c0_26 = arith.constant 0 : index
    %55 = vector.load %arg6[%c1, %c0_25, %c0_26] : memref<2x8x64xf32, #tpu.memory_space<vmem>>, vector<1x8x64xf32>
    %56 = vector.shape_cast %55 : vector<1x8x64xf32> to vector<8x64xf32>
    %57 = vector.shape_cast %54 : vector<8x64xf32> to vector<1x8x64xf32>
    tpu.vector_store %arg6[%c1, %c0_25, %c0_26], %57 {strides = array<i32>} : memref<2x8x64xf32, #tpu.memory_space<vmem>>, vector<1x8x64xf32>,
    %c0_27 = arith.constant 0 : index
    %c0_28 = arith.constant 0 : index
    %c0_29 = arith.constant 0 : index
    %58 = vector.load %arg6[%c0_27, %c0_28, %c0_29] : memref<2x8x64xf32, #tpu.memory_space<vmem>>, vector<2x8x64xf32>
    %c0_30 = arith.constant 0 : index
    %c0_31 = arith.constant 0 : index
    %c0_32 = arith.constant 0 : index
    %59 = vector.load %arg4[%c0_30, %c0_31, %c0_32] : memref<8x64x10xf32, #tpu.memory_space<vmem>>, vector<8x64x10xf32>
    %60 = vector.extract_strided_slice %58 {offsets = [0, 0, 0], sizes = [2, 1, 64], strides = [1, 1, 1]} : vector<2x8x64xf32> to vector<2x1x64xf32>
    %61 = vector.shape_cast %60 : vector<2x1x64xf32> to vector<2x64xf32>
    %62 = vector.extract_strided_slice %59 {offsets = [0, 0, 0], sizes = [1, 64, 10], strides = [1, 1, 1]} : vector<8x64x10xf32> to vector<1x64x10xf32>
    %63 = vector.shape_cast %62 : vector<1x64x10xf32> to vector<64x10xf32>
    %cst_33 = arith.constant dense<0.000000e+00> : vector<2x10xf32>
    %64 = tpu.matmul %61, %63, %cst_33 {dimension_numbers = #tpu.dot_dimension_numbers<[1], [0], [0], [1], [0, 0, 1, 1], [], []>} : vector<2x64xf32>, vector<64x10xf32>, vector<2x10xf32> -> vector<2x10xf32>
    %65 = vector.extract_strided_slice %58 {offsets = [0, 1, 0], sizes = [2, 1, 64], strides = [1, 1, 1]} : vector<2x8x64xf32> to vector<2x1x64xf32>
    %66 = vector.shape_cast %65 : vector<2x1x64xf32> to vector<2x64xf32>
    %67 = vector.extract_strided_slice %59 {offsets = [1, 0, 0], sizes = [1, 64, 10], strides = [1, 1, 1]} : vector<8x64x10xf32> to vector<1x64x10xf32>
    %68 = vector.shape_cast %67 : vector<1x64x10xf32> to vector<64x10xf32>
    %cst_34 = arith.constant dense<0.000000e+00> : vector<2x10xf32>
    %69 = tpu.matmul %66, %68, %cst_34 {dimension_numbers = #tpu.dot_dimension_numbers<[1], [0], [0], [1], [0, 0, 1, 1], [], []>} : vector<2x64xf32>, vector<64x10xf32>, vector<2x10xf32> -> vector<2x10xf32>
    %70 = arith.addf %64, %69 : vector<2x10xf32>
    %71 = vector.extract_strided_slice %58 {offsets = [0, 2, 0], sizes = [2, 1, 64], strides = [1, 1, 1]} : vector<2x8x64xf32> to vector<2x1x64xf32>
    %72 = vector.shape_cast %71 : vector<2x1x64xf32> to vector<2x64xf32>
    %73 = vector.extract_strided_slice %59 {offsets = [2, 0, 0], sizes = [1, 64, 10], strides = [1, 1, 1]} : vector<8x64x10xf32> to vector<1x64x10xf32>
    %74 = vector.shape_cast %73 : vector<1x64x10xf32> to vector<64x10xf32>
    %cst_35 = arith.constant dense<0.000000e+00> : vector<2x10xf32>
    %75 = tpu.matmul %72, %74, %cst_35 {dimension_numbers = #tpu.dot_dimension_numbers<[1], [0], [0], [1], [0, 0, 1, 1], [], []>} : vector<2x64xf32>, vector<64x10xf32>, vector<2x10xf32> -> vector<2x10xf32>
    %76 = arith.addf %70, %75 : vector<2x10xf32>
    %77 = vector.extract_strided_slice %58 {offsets = [0, 3, 0], sizes = [2, 1, 64], strides = [1, 1, 1]} : vector<2x8x64xf32> to vector<2x1x64xf32>
    %78 = vector.shape_cast %77 : vector<2x1x64xf32> to vector<2x64xf32>
    %79 = vector.extract_strided_slice %59 {offsets = [3, 0, 0], sizes = [1, 64, 10], strides = [1, 1, 1]} : vector<8x64x10xf32> to vector<1x64x10xf32>
    %80 = vector.shape_cast %79 : vector<1x64x10xf32> to vector<64x10xf32>
    %cst_36 = arith.constant dense<0.000000e+00> : vector<2x10xf32>
    %81 = tpu.matmul %78, %80, %cst_36 {dimension_numbers = #tpu.dot_dimension_numbers<[1], [0], [0], [1], [0, 0, 1, 1], [], []>} : vector<2x64xf32>, vector<64x10xf32>, vector<2x10xf32> -> vector<2x10xf32>
    %82 = arith.addf %76, %81 : vector<2x10xf32>
    %83 = vector.extract_strided_slice %58 {offsets = [0, 4, 0], sizes = [2, 1, 64], strides = [1, 1, 1]} : vector<2x8x64xf32> to vector<2x1x64xf32>
    %84 = vector.shape_cast %83 : vector<2x1x64xf32> to vector<2x64xf32>
    %85 = vector.extract_strided_slice %59 {offsets = [4, 0, 0], sizes = [1, 64, 10], strides = [1, 1, 1]} : vector<8x64x10xf32> to vector<1x64x10xf32>
    %86 = vector.shape_cast %85 : vector<1x64x10xf32> to vector<64x10xf32>
    %cst_37 = arith.constant dense<0.000000e+00> : vector<2x10xf32>
    %87 = tpu.matmul %84, %86, %cst_37 {dimension_numbers = #tpu.dot_dimension_numbers<[1], [0], [0], [1], [0, 0, 1, 1], [], []>} : vector<2x64xf32>, vector<64x10xf32>, vector<2x10xf32> -> vector<2x10xf32>
    %88 = arith.addf %82, %87 : vector<2x10xf32>
    %89 = vector.extract_strided_slice %58 {offsets = [0, 5, 0], sizes = [2, 1, 64], strides = [1, 1, 1]} : vector<2x8x64xf32> to vector<2x1x64xf32>
    %90 = vector.shape_cast %89 : vector<2x1x64xf32> to vector<2x64xf32>
    %91 = vector.extract_strided_slice %59 {offsets = [5, 0, 0], sizes = [1, 64, 10], strides = [1, 1, 1]} : vector<8x64x10xf32> to vector<1x64x10xf32>
    %92 = vector.shape_cast %91 : vector<1x64x10xf32> to vector<64x10xf32>
    %cst_38 = arith.constant dense<0.000000e+00> : vector<2x10xf32>
    %93 = tpu.matmul %90, %92, %cst_38 {dimension_numbers = #tpu.dot_dimension_numbers<[1], [0], [0], [1], [0, 0, 1, 1], [], []>} : vector<2x64xf32>, vector<64x10xf32>, vector<2x10xf32> -> vector<2x10xf32>
    %94 = arith.addf %88, %93 : vector<2x10xf32>
    %95 = vector.extract_strided_slice %58 {offsets = [0, 6, 0], sizes = [2, 1, 64], strides = [1, 1, 1]} : vector<2x8x64xf32> to vector<2x1x64xf32>
    %96 = vector.shape_cast %95 : vector<2x1x64xf32> to vector<2x64xf32>
    %97 = vector.extract_strided_slice %59 {offsets = [6, 0, 0], sizes = [1, 64, 10], strides = [1, 1, 1]} : vector<8x64x10xf32> to vector<1x64x10xf32>
    %98 = vector.shape_cast %97 : vector<1x64x10xf32> to vector<64x10xf32>
    %cst_39 = arith.constant dense<0.000000e+00> : vector<2x10xf32>
    %99 = tpu.matmul %96, %98, %cst_39 {dimension_numbers = #tpu.dot_dimension_numbers<[1], [0], [0], [1], [0, 0, 1, 1], [], []>} : vector<2x64xf32>, vector<64x10xf32>, vector<2x10xf32> -> vector<2x10xf32>
    %100 = arith.addf %94, %99 : vector<2x10xf32>
    %101 = vector.extract_strided_slice %58 {offsets = [0, 7, 0], sizes = [2, 1, 64], strides = [1, 1, 1]} : vector<2x8x64xf32> to vector<2x1x64xf32>
    %102 = vector.shape_cast %101 : vector<2x1x64xf32> to vector<2x64xf32>
    %103 = vector.extract_strided_slice %59 {offsets = [7, 0, 0], sizes = [1, 64, 10], strides = [1, 1, 1]} : vector<8x64x10xf32> to vector<1x64x10xf32>
    %104 = vector.shape_cast %103 : vector<1x64x10xf32> to vector<64x10xf32>
    %cst_40 = arith.constant dense<0.000000e+00> : vector<2x10xf32>
    %105 = tpu.matmul %102, %104, %cst_40 {dimension_numbers = #tpu.dot_dimension_numbers<[1], [0], [0], [1], [0, 0, 1, 1], [], []>} : vector<2x64xf32>, vector<64x10xf32>, vector<2x10xf32> -> vector<2x10xf32>
    %106 = arith.addf %100, %105 : vector<2x10xf32>
    %c0_41 = arith.constant 0 : index
    %c0_42 = arith.constant 0 : index
    %107 = vector.load %arg5[%c0_41, %c0_42] : memref<2x10xf32, #tpu.memory_space<vmem>>, vector<2x10xf32>
    tpu.vector_store %arg5[%c0_41, %c0_42], %106 {strides = array<i32>} : memref<2x10xf32, #tpu.memory_space<vmem>>, vector<2x10xf32>,
    return
  }
}

</mosaic_0001>

<llo_original>
// kernel: tpu_custom_call.1
$region0: #{tpu_custom_call.1}
  #allocation0 [shape = 'u32[]', space=smem, size = 0x4, offset = 0x4, fixed_abs, tag = 'smem constant byte address 0x4 - core index']
  #allocation1 [shape = 'u32[144,128]{1,0:T(1,128)}', space=vmem, size = 0x12000, scoped, tag = 'internal scratch']
  %s0 = inlined_call_operand.vmem [shape: f32[64,128], index: 0, kind: input, shape index: {}]
  %s1 = inlined_call_operand.vmem [shape: f32[128,64], index: 1, kind: input, shape index: {}]
  %s2 = inlined_call_operand.vmem [shape: f32[8,64], index: 2, kind: input, shape index: {}]
  %s3 = inlined_call_operand.vmem [shape: f32[8,1], index: 3, kind: input, shape index: {}]
  %s4 = inlined_call_operand.vmem [shape: f32[8,64,10], index: 4, kind: input, shape index: {}]
  %s5 = inlined_call_operand.hbm [shape: f32[2,10], index: 5, kind: output, shape index: {0}]
  %s6 = inlined_call_operand.hbm [shape: f32[2,8,64], index: 6, kind: output, shape index: {1}]
  %s7 = inlined_call_operand.hbm [shape: f32[1,128], index: 7, kind: output, shape index: {2}]
  %8 = xla_tuple %s5, %s6, %s7
  %s9 = sld [smem:[#allocation0]]
  $region46: #{tpu_custom_call.1} parent=0
    _
  %s11 = ssub.s32 1, %s9
  %s12 = scalar_select 0, %s11, %s9
  $region1: #{tpu_custom_call.1} parent=0
    #allocation2 [shape = 'u8[1024]{0}', space=vmem, size = 0x400, scoped, tag = 'output window, operand 0, single buffered']
    #allocation3 [shape = 's32[1]{0}', space=sflag, size = 0x4, scoped, tag = 'scoped memory for tpu_custom_call.1']
    #allocation4 [shape = 'u8[8192]{0}', space=vmem, size = 0x2000, scoped, tag = 'output window, operand 1, single buffered']
    #allocation5 [shape = 's32[1]{0}', space=sflag, size = 0x4, scoped, tag = 'scoped memory for tpu_custom_call.1']
    #allocation6 [shape = 'u8[512]{0}', space=vmem, size = 0x400, scoped, tag = 'output window, operand 2, single buffered']
    %13 = vsyncpa [#allocation3], 0
    %14 = vsyncpa [#allocation5], 0
    // Predicated region
    $region2: #{tpu_custom_call.1} parent=1 // pred_check
      _
    $region3: #{tpu_custom_call.1} parent=1 // pred_check_branch
      %16 = sbr.rel (0) target = $region5
    $region4: #{tpu_custom_call.1} parent=1 // pred_region
      _
    $region5: #{tpu_custom_call.1} parent=1 // pred_fallthru
      _
    // Predicated region
    $region6: #{tpu_custom_call.1} parent=1 // pred_check
      _
    $region7: #{tpu_custom_call.1} parent=1 // pred_check_branch
      %18 = sbr.rel (0) target = $region9
    $region8: #{tpu_custom_call.1} parent=1 // pred_region
      _
    $region9: #{tpu_custom_call.1} parent=1 // pred_fallthru
      _
    // Predicated region
    $region10: #{tpu_custom_call.1} parent=1 // pred_check
      _
    $region11: #{tpu_custom_call.1} parent=1 // pred_check_branch
      %20 = sbr.rel (0) target = $region13
    $region12: #{tpu_custom_call.1} parent=1 // pred_region
      _
    $region13: #{tpu_custom_call.1} parent=1 // pred_fallthru
      _
    // Predicated region
    $region14: #{tpu_custom_call.1} parent=1 // pred_check
      _
    $region15: #{tpu_custom_call.1} parent=1 // pred_check_branch
      %22 = sbr.rel (0) target = $region17
    $region16: #{tpu_custom_call.1} parent=1 // pred_region
      _
    $region17: #{tpu_custom_call.1} parent=1 // pred_fallthru
      _
    // Predicated region
    $region18: #{tpu_custom_call.1} parent=1 // pred_check
      _
    $region19: #{tpu_custom_call.1} parent=1 // pred_check_branch
      %24 = sbr.rel (0) target = $region21
    $region20: #{tpu_custom_call.1} parent=1 // pred_region
      _
    $region21: #{tpu_custom_call.1} parent=1 // pred_fallthru
      _
    %v25 = vld [vmem:[%s0] sm:$0xff]
    %v26 = vld [vmem:[%s0 + $0x8] sm:$0xff]
    %v27 = vld [vmem:[%s0 + $0x10] sm:$0xff]
    %v28 = vld [vmem:[%s0 + $0x18] sm:$0xff]
    %v29 = vld [vmem:[%s0 + $0x20] sm:$0xff]
    %v30 = vld [vmem:[%s0 + $0x28] sm:$0xff]
    %v31 = vld [vmem:[%s0 + $0x30] sm:$0xff]
    %v32 = vld [vmem:[%s0 + $0x38] sm:$0xff]
    %v33 = vld [vmem:[%s2] sm:$0xff]
    %v34 = vld [vmem:[%s3] sm:$0xff]
    %36 = vset.pattern.permute.xlu0 0
    %37 = vperm.xlu0 %36, %v34
    %v38 = vpop.permute.xlu0 %37
    %vm40 = vcmask 523264
    %v42 = vsel %vm40, %v33, 0
    %44 = vmatprep.subr.mxu0 0.0
    %45 = vmatpush1.msra.mxu0 %v25
    %46 = vmatprep.subr.mxu0 0.0
    %47 = vmatpush1.msra.mxu0 %v26
    %48 = vmatprep.subr.mxu0 0.0
    %49 = vmatpush1.msra.mxu0 %v27
    %50 = vmatprep.subr.mxu0 0.0
    %51 = vmatpush1.msra.mxu0 %v28
    %52 = vmatprep.subr.mxu0 0.0
    %53 = vmatpush1.msra.mxu0 %v29
    %54 = vmatprep.subr.mxu0 0.0
    %55 = vmatpush1.msra.mxu0 %v30
    %56 = vmatprep.subr.mxu0 0.0
    %57 = vmatpush1.msra.mxu0 %v31
    %58 = vmatprep.subr.mxu0 0.0
    %59 = vmatpush1.msra.mxu0 %v32
    %60 = vmatprep.subr.mxu0 0.0
    %61 = vmatpush1.msra.mxu0 0.0
    %62 = vmatprep.subr.mxu0 0.0
    %63 = vmatpush1.msra.mxu0 0.0
    %64 = vmatprep.subr.mxu0 0.0
    %65 = vmatpush1.msra.mxu0 0.0
    %66 = vmatprep.subr.mxu0 0.0
    %67 = vmatpush1.msra.mxu0 0.0
    %68 = vmatprep.subr.mxu0 0.0
    %69 = vmatpush1.msra.mxu0 0.0
    %70 = vmatprep.subr.mxu0 0.0
    %71 = vmatpush1.msra.mxu0 0.0
    %72 = vmatprep.subr.mxu0 0.0
    %73 = vmatpush1.msra.mxu0 0.0
    %74 = vmatprep.subr.mxu0 0.0
    %75 = vmatpush1.msra.mxu0 0.0
    %76 = vmatprep.subr.mxu0 0.0
    %77 = vmatpush1.msra.mxu0 0.0
    %78 = vmatprep.subr.mxu0 0.0
    %79 = vmatpush1.msra.mxu0 0.0
    %80 = vmatprep.subr.mxu0 0.0
    %81 = vmatpush1.msra.mxu0 0.0
    %82 = vmatprep.subr.mxu0 0.0
    %83 = vmatpush1.msra.mxu0 0.0
    %84 = vmatprep.subr.mxu0 0.0
    %85 = vmatpush1.msra.mxu0 0.0
    %86 = vmatprep.subr.mxu0 0.0
    %87 = vmatpush1.msra.mxu0 0.0
    %88 = vmatprep.subr.mxu0 0.0
    %89 = vmatpush1.msra.mxu0 0.0
    %90 = vmatprep.subr.mxu0 0.0
    %91 = vmatpush1.msra.mxu0 0.0
    %92 = vmatprep.subr.mxu0 0.0
    %93 = vmatpush1.msra.mxu0 0.0
    %94 = vmatprep.subr.mxu0 0.0
    %95 = vmatpush1.msra.mxu0 0.0
    %96 = vmatprep.subr.mxu0 0.0
    %97 = vmatpush1.msra.mxu0 0.0
    %98 = vmatprep.subr.mxu0 0.0
    %99 = vmatpush1.msra.mxu0 0.0
    %100 = vmatprep.subr.mxu0 0.0
    %101 = vmatpush1.msra.mxu0 0.0
    %102 = vmatprep.subr.mxu0 0.0
    %103 = vmatpush1.msra.mxu0 0.0
    %104 = vmatprep.subr.mxu0 0.0
    %105 = vmatpush1.msra.mxu0 0.0
    %106 = vmatprep.subr.mxu0 0.0
    %107 = vmatpush1.msra.mxu0 0.0
    %108 = vmatprep.mubr.f32.mxu0 0.0
    %109 = vmatmul.mubr.f32.gmra.mrb[0].mxu0 %v42
    %v110 = vpop.f32.mrb[0].mxu0
    %v111 = vadd.f32 %v38, %v110
    %v112 = vpop.f32.mrb[0].mxu0
    %113 = vdwg.mxu0
    %v114 = vmax.f32 %v111, 0.0
    %v115 = vrot.slane %v114, 4
    %v116 = vadd.f32 %v114, %v115
    %v117 = vrot.slane %v116, 2
    %v118 = vadd.f32 %v116, %v117
    %v119 = vrot.slane %v118, 1
    %v120 = vadd.f32 %v118, %v119
    %v121 = vrcp.pop 8.0
    %v122 = vmul.f32 %v120, %v121
    %123 = vst [vmem:[#allocation6] sm:$0x1] %v122
    %v124 = vld [vmem:[%s1] sm:$0xff]
    %v125 = vld [vmem:[%s1 + $0x8] sm:$0xff]
    %v126 = vld [vmem:[%s1 + $0x10] sm:$0xff]
    %v127 = vld [vmem:[%s1 + $0x18] sm:$0xff]
    %v128 = vld [vmem:[%s1 + $0x20] sm:$0xff]
    %v129 = vld [vmem:[%s1 + $0x28] sm:$0xff]
    %v130 = vld [vmem:[%s1 + $0x30] sm:$0xff]
    %v131 = vld [vmem:[%s1 + $0x38] sm:$0xff]
    %v132 = vld [vmem:[%s1 + $0x40] sm:$0xff]
    %v133 = vld [vmem:[%s1 + $0x48] sm:$0xff]
    %v134 = vld [vmem:[%s1 + $0x50] sm:$0xff]
    %v135 = vld [vmem:[%s1 + $0x58] sm:$0xff]
    %v136 = vld [vmem:[%s1 + $0x60] sm:$0xff]
    %v137 = vld [vmem:[%s1 + $0x68] sm:$0xff]
    %v138 = vld [vmem:[%s1 + $0x70] sm:$0xff]
    %v139 = vld [vmem:[%s1 + $0x78] sm:$0xff]
    %v141 = vsel %vm40, %v114, 0
    %143 = vmatprep.subr.mxu0 0.0
    %144 = vmatpush1.msra.mxu0 %v124
    %145 = vmatprep.subr.mxu0 0.0
    %146 = vmatpush1.msra.mxu0 %v125
    %147 = vmatprep.subr.mxu0 0.0
    %148 = vmatpush1.msra.mxu0 %v126
    %149 = vmatprep.subr.mxu0 0.0
    %150 = vmatpush1.msra.mxu0 %v127
    %151 = vmatprep.subr.mxu0 0.0
    %152 = vmatpush1.msra.mxu0 %v128
    %153 = vmatprep.subr.mxu0 0.0
    %154 = vmatpush1.msra.mxu0 %v129
    %155 = vmatprep.subr.mxu0 0.0
    %156 = vmatpush1.msra.mxu0 %v130
    %157 = vmatprep.subr.mxu0 0.0
    %158 = vmatpush1.msra.mxu0 %v131
    %159 = vmatprep.subr.mxu0 0.0
    %160 = vmatpush1.msra.mxu0 0.0
    %161 = vmatprep.subr.mxu0 0.0
    %162 = vmatpush1.msra.mxu0 0.0
    %163 = vmatprep.subr.mxu0 0.0
    %164 = vmatpush1.msra.mxu0 0.0
    %165 = vmatprep.subr.mxu0 0.0
    %166 = vmatpush1.msra.mxu0 0.0
    %167 = vmatprep.subr.mxu0 0.0
    %168 = vmatpush1.msra.mxu0 0.0
    %169 = vmatprep.subr.mxu0 0.0
    %170 = vmatpush1.msra.mxu0 0.0
    %171 = vmatprep.subr.mxu0 0.0
    %172 = vmatpush1.msra.mxu0 0.0
    %173 = vmatprep.subr.mxu0 0.0
    %174 = vmatpush1.msra.mxu0 0.0
    %175 = vmatprep.subr.mxu0 0.0
    %176 = vmatpush1.msra.mxu0 0.0
    %177 = vmatprep.subr.mxu0 0.0
    %178 = vmatpush1.msra.mxu0 0.0
    %179 = vmatprep.subr.mxu0 0.0
    %180 = vmatpush1.msra.mxu0 0.0
    %181 = vmatprep.subr.mxu0 0.0
    %182 = vmatpush1.msra.mxu0 0.0
    %183 = vmatprep.subr.mxu0 0.0
    %184 = vmatpush1.msra.mxu0 0.0
    %185 = vmatprep.subr.mxu0 0.0
    %186 = vmatpush1.msra.mxu0 0.0
    %187 = vmatprep.subr.mxu0 0.0
    %188 = vmatpush1.msra.mxu0 0.0
    %189 = vmatprep.subr.mxu0 0.0
    %190 = vmatpush1.msra.mxu0 0.0
    %191 = vmatprep.subr.mxu0 0.0
    %192 = vmatpush1.msra.mxu0 0.0
    %193 = vmatprep.subr.mxu0 0.0
    %194 = vmatpush1.msra.mxu0 0.0
    %195 = vmatprep.subr.mxu0 0.0
    %196 = vmatpush1.msra.mxu0 0.0
    %197 = vmatprep.subr.mxu0 0.0
    %198 = vmatpush1.msra.mxu0 0.0
    %199 = vmatprep.subr.mxu0 0.0
    %200 = vmatpush1.msra.mxu0 0.0
    %201 = vmatprep.subr.mxu0 0.0
    %202 = vmatpush1.msra.mxu0 0.0
    %203 = vmatprep.subr.mxu0 0.0
    %204 = vmatpush1.msra.mxu0 0.0
    %205 = vmatprep.subr.mxu0 0.0
    %206 = vmatpush1.msra.mxu0 0.0
    %207 = vmatprep.mubr.f32.mxu0 0.0
    %208 = vmatmul.mubr.f32.gmra.mrb[0].mxu0 %v141
    %v209 = vpop.f32.mrb[0].mxu0
    %v210 = vadd.f32 0.0, %v209
    %v211 = vpop.f32.mrb[0].mxu0
    %212 = vdwg.mxu0
    %v213 = vmul.f32 %v210, 0.015625
    %v214 = vand.u32 2147483647, %v213
    %v215 = vadd.f32 %v214, 1e-12
    %v216 = vrsqrt.pop %v215
    %v217 = vmul.f32 %v213, %v216
    %v218 = vmul.f32 %v217, %v217
    %v219 = vsel %vm40, %v218, 0.0
    %220 = vadd.xlane.f32.xlu0 %v219
    %v221 = vpop.xlane.xlu0 %220
    %v222 = vrot.slane %v221, 4
    %v223 = vadd.f32 %v221, %v222
    %v224 = vrot.slane %v223, 2
    %v225 = vadd.f32 %v223, %v224
    %v226 = vrot.slane %v225, 1
    %v227 = vadd.f32 %v225, %v226
    %s228 = vtos %v227
    %s229 = smax.f32 %s228, 1e-24
    %v230 = vstv %s229
    %v231 = vrsqrt.pop %v230
    %s232 = vtos %v231
    %v233 = vstv %s232
    %v234 = vmul.f32 %v217, %v233
    %235 = vst.msk [vmem:[#allocation4] sm:$0xff] %vm40, %v234
    %236 = vrot.lane.b32.xlu0 %v114, 64
    %v237 = vpop.permute.xlu0 %236
    %v238 = vsel %vm40, %v237, 0
    %240 = vmatprep.subr.mxu0 0.0
    %241 = vmatpush1.msra.mxu0 %v132
    %242 = vmatprep.subr.mxu0 0.0
    %243 = vmatpush1.msra.mxu0 %v133
    %244 = vmatprep.subr.mxu0 0.0
    %245 = vmatpush1.msra.mxu0 %v134
    %246 = vmatprep.subr.mxu0 0.0
    %247 = vmatpush1.msra.mxu0 %v135
    %248 = vmatprep.subr.mxu0 0.0
    %249 = vmatpush1.msra.mxu0 %v136
    %250 = vmatprep.subr.mxu0 0.0
    %251 = vmatpush1.msra.mxu0 %v137
    %252 = vmatprep.subr.mxu0 0.0
    %253 = vmatpush1.msra.mxu0 %v138
    %254 = vmatprep.subr.mxu0 0.0
    %255 = vmatpush1.msra.mxu0 %v139
    %256 = vmatprep.subr.mxu0 0.0
    %257 = vmatpush1.msra.mxu0 0.0
    %258 = vmatprep.subr.mxu0 0.0
    %259 = vmatpush1.msra.mxu0 0.0
    %260 = vmatprep.subr.mxu0 0.0
    %261 = vmatpush1.msra.mxu0 0.0
    %262 = vmatprep.subr.mxu0 0.0
    %263 = vmatpush1.msra.mxu0 0.0
    %264 = vmatprep.subr.mxu0 0.0
    %265 = vmatpush1.msra.mxu0 0.0
    %266 = vmatprep.subr.mxu0 0.0
    %267 = vmatpush1.msra.mxu0 0.0
    %268 = vmatprep.subr.mxu0 0.0
    %269 = vmatpush1.msra.mxu0 0.0
    %270 = vmatprep.subr.mxu0 0.0
    %271 = vmatpush1.msra.mxu0 0.0
    %272 = vmatprep.subr.mxu0 0.0
    %273 = vmatpush1.msra.mxu0 0.0
    %274 = vmatprep.subr.mxu0 0.0
    %275 = vmatpush1.msra.mxu0 0.0
    %276 = vmatprep.subr.mxu0 0.0
    %277 = vmatpush1.msra.mxu0 0.0
    %278 = vmatprep.subr.mxu0 0.0
    %279 = vmatpush1.msra.mxu0 0.0
    %280 = vmatprep.subr.mxu0 0.0
    %281 = vmatpush1.msra.mxu0 0.0
    %282 = vmatprep.subr.mxu0 0.0
    %283 = vmatpush1.msra.mxu0 0.0
    %284 = vmatprep.subr.mxu0 0.0
    %285 = vmatpush1.msra.mxu0 0.0
    %286 = vmatprep.subr.mxu0 0.0
    %287 = vmatpush1.msra.mxu0 0.0
    %288 = vmatprep.subr.mxu0 0.0
    %289 = vmatpush1.msra.mxu0 0.0
    %290 = vmatprep.subr.mxu0 0.0
    %291 = vmatpush1.msra.mxu0 0.0
    %292 = vmatprep.subr.mxu0 0.0
    %293 = vmatpush1.msra.mxu0 0.0
    %294 = vmatprep.subr.mxu0 0.0
    %295 = vmatpush1.msra.mxu0 0.0
    %296 = vmatprep.subr.mxu0 0.0
    %297 = vmatpush1.msra.mxu0 0.0
    %298 = vmatprep.subr.mxu0 0.0
    %299 = vmatpush1.msra.mxu0 0.0
    %300 = vmatprep.subr.mxu0 0.0
    %301 = vmatpush1.msra.mxu0 0.0
    %302 = vmatprep.subr.mxu0 0.0
    %303 = vmatpush1.msra.mxu0 0.0
    %304 = vmatprep.mubr.f32.mxu0 0.0
    %305 = vmatmul.mubr.f32.gmra.mrb[0].mxu0 %v238
    %v306 = vpop.f32.mrb[0].mxu0
    %v307 = vadd.f32 0.0, %v306
    %v308 = vpop.f32.mrb[0].mxu0
    %309 = vdwg.mxu0
    %v310 = vmul.f32 %v307, 0.015625
    %v311 = vand.u32 2147483647, %v310
    %v312 = vadd.f32 %v311, 1e-12
    %v313 = vrsqrt.pop %v312
    %v314 = vmul.f32 %v310, %v313
    %v315 = vmul.f32 %v314, %v314
    %v316 = vsel %vm40, %v315, 0.0
    %317 = vadd.xlane.f32.xlu0 %v316
    %v318 = vpop.xlane.xlu0 %317
    %v319 = vrot.slane %v318, 4
    %v320 = vadd.f32 %v318, %v319
    %v321 = vrot.slane %v320, 2
    %v322 = vadd.f32 %v320, %v321
    %v323 = vrot.slane %v322, 1
    %v324 = vadd.f32 %v322, %v323
    %s325 = vtos %v324
    %s326 = smax.f32 %s325, 1e-24
    %v327 = vstv %s326
    %v328 = vrsqrt.pop %v327
    %s329 = vtos %v328
    %v330 = vstv %s329
    %v331 = vmul.f32 %v314, %v330
    %s332 = scalar_lea.vmem [#allocation4], 8
    %333 = vst.msk [vmem:[%s332] sm:$0xff] %vm40, %v331
    %v334 = vld [vmem:[#allocation4] sm:$0xff]
    %v335 = vld [vmem:[#allocation4 + $0x8] sm:$0xff]
    %v336 = vld [vmem:[%s4] sm:$0xff]
    %v337 = vld [vmem:[%s4 + $0x8] sm:$0xff]
    %v338 = vld [vmem:[%s4 + $0x10] sm:$0xff]
    %v339 = vld [vmem:[%s4 + $0x18] sm:$0xff]
    %v340 = vld [vmem:[%s4 + $0x20] sm:$0xff]
    %v341 = vld [vmem:[%s4 + $0x28] sm:$0xff]
    %v342 = vld [vmem:[%s4 + $0x30] sm:$0xff]
    %v343 = vld [vmem:[%s4 + $0x38] sm:$0xff]
    %v344 = vld [vmem:[%s4 + $0x40] sm:$0xff]
    %v345 = vld [vmem:[%s4 + $0x48] sm:$0xff]
    %v346 = vld [vmem:[%s4 + $0x50] sm:$0xff]
    %v347 = vld [vmem:[%s4 + $0x58] sm:$0xff]
    %v348 = vld [vmem:[%s4 + $0x60] sm:$0xff]
    %v349 = vld [vmem:[%s4 + $0x68] sm:$0xff]
    %v350 = vld [vmem:[%s4 + $0x70] sm:$0xff]
    %v351 = vld [vmem:[%s4 + $0x78] sm:$0xff]
    %v352 = vld [vmem:[%s4 + $0x80] sm:$0xff]
    %v353 = vld [vmem:[%s4 + $0x88] sm:$0xff]
    %v354 = vld [vmem:[%s4 + $0x90] sm:$0xff]
    %v355 = vld [vmem:[%s4 + $0x98] sm:$0xff]
    %v356 = vld [vmem:[%s4 + $0xa0] sm:$0xff]
    %v357 = vld [vmem:[%s4 + $0xa8] sm:$0xff]
    %v358 = vld [vmem:[%s4 + $0xb0] sm:$0xff]
    %v359 = vld [vmem:[%s4 + $0xb8] sm:$0xff]
    %v360 = vld [vmem:[%s4 + $0xc0] sm:$0xff]
    %v361 = vld [vmem:[%s4 + $0xc8] sm:$0xff]
    %v362 = vld [vmem:[%s4 + $0xd0] sm:$0xff]
    %v363 = vld [vmem:[%s4 + $0xd8] sm:$0xff]
    %v364 = vld [vmem:[%s4 + $0xe0] sm:$0xff]
    %v365 = vld [vmem:[%s4 + $0xe8] sm:$0xff]
    %v366 = vld [vmem:[%s4 + $0xf0] sm:$0xff]
    %v367 = vld [vmem:[%s4 + $0xf8] sm:$0xff]
    %v368 = vld [vmem:[%s4 + $0x100] sm:$0xff]
    %v369 = vld [vmem:[%s4 + $0x108] sm:$0xff]
    %v370 = vld [vmem:[%s4 + $0x110] sm:$0xff]
    %v371 = vld [vmem:[%s4 + $0x118] sm:$0xff]
    %v372 = vld [vmem:[%s4 + $0x120] sm:$0xff]
    %v373 = vld [vmem:[%s4 + $0x128] sm:$0xff]
    %v374 = vld [vmem:[%s4 + $0x130] sm:$0xff]
    %v375 = vld [vmem:[%s4 + $0x138] sm:$0xff]
    %v376 = vld [vmem:[%s4 + $0x140] sm:$0xff]
    %v377 = vld [vmem:[%s4 + $0x148] sm:$0xff]
    %v378 = vld [vmem:[%s4 + $0x150] sm:$0xff]
    %v379 = vld [vmem:[%s4 + $0x158] sm:$0xff]
    %v380 = vld [vmem:[%s4 + $0x160] sm:$0xff]
    %v381 = vld [vmem:[%s4 + $0x168] sm:$0xff]
    %v382 = vld [vmem:[%s4 + $0x170] sm:$0xff]
    %v383 = vld [vmem:[%s4 + $0x178] sm:$0xff]
    %v384 = vld [vmem:[%s4 + $0x180] sm:$0xff]
    %v385 = vld [vmem:[%s4 + $0x188] sm:$0xff]
    %v386 = vld [vmem:[%s4 + $0x190] sm:$0xff]
    %v387 = vld [vmem:[%s4 + $0x198] sm:$0xff]
    %v388 = vld [vmem:[%s4 + $0x1a0] sm:$0xff]
    %v389 = vld [vmem:[%s4 + $0x1a8] sm:$0xff]
    %v390 = vld [vmem:[%s4 + $0x1b0] sm:$0xff]
    %v391 = vld [vmem:[%s4 + $0x1b8] sm:$0xff]
    %v392 = vld [vmem:[%s4 + $0x1c0] sm:$0xff]
    %v393 = vld [vmem:[%s4 + $0x1c8] sm:$0xff]
    %v394 = vld [vmem:[%s4 + $0x1d0] sm:$0xff]
    %v395 = vld [vmem:[%s4 + $0x1d8] sm:$0xff]
    %v396 = vld [vmem:[%s4 + $0x1e0] sm:$0xff]
    %v397 = vld [vmem:[%s4 + $0x1e8] sm:$0xff]
    %v398 = vld [vmem:[%s4 + $0x1f0] sm:$0xff]
    %v399 = vld [vmem:[%s4 + $0x1f8] sm:$0xff]
    %v402 = vrot.slane %v334, 1
    %vm403 = vcmask 1041409
    %v404 = vsel %vm403, %v335, %v402
    %v405 = vsel %vm40, %v404, 0
    %407 = vmatprep.subr.mxu0 0.0
    %408 = vmatpush1.msra.mxu0 %v344
    %409 = vmatprep.subr.mxu0 0.0
    %410 = vmatpush1.msra.mxu0 %v345
    %411 = vmatprep.subr.mxu0 0.0
    %412 = vmatpush1.msra.mxu0 %v346
    %413 = vmatprep.subr.mxu0 0.0
    %414 = vmatpush1.msra.mxu0 %v347
    %415 = vmatprep.subr.mxu0 0.0
    %416 = vmatpush1.msra.mxu0 %v348
    %417 = vmatprep.subr.mxu0 0.0
    %418 = vmatpush1.msra.mxu0 %v349
    %419 = vmatprep.subr.mxu0 0.0
    %420 = vmatpush1.msra.mxu0 %v350
    %421 = vmatprep.subr.mxu0 0.0
    %422 = vmatpush1.msra.mxu0 %v351
    %423 = vmatprep.subr.mxu0 0.0
    %424 = vmatpush1.msra.mxu0 0.0
    %425 = vmatprep.subr.mxu0 0.0
    %426 = vmatpush1.msra.mxu0 0.0
    %427 = vmatprep.subr.mxu0 0.0
    %428 = vmatpush1.msra.mxu0 0.0
    %429 = vmatprep.subr.mxu0 0.0
    %430 = vmatpush1.msra.mxu0 0.0
    %431 = vmatprep.subr.mxu0 0.0
    %432 = vmatpush1.msra.mxu0 0.0
    %433 = vmatprep.subr.mxu0 0.0
    %434 = vmatpush1.msra.mxu0 0.0
    %435 = vmatprep.subr.mxu0 0.0
    %436 = vmatpush1.msra.mxu0 0.0
    %437 = vmatprep.subr.mxu0 0.0
    %438 = vmatpush1.msra.mxu0 0.0
    %439 = vmatprep.subr.mxu0 0.0
    %440 = vmatpush1.msra.mxu0 0.0
    %441 = vmatprep.subr.mxu0 0.0
    %442 = vmatpush1.msra.mxu0 0.0
    %443 = vmatprep.subr.mxu0 0.0
    %444 = vmatpush1.msra.mxu0 0.0
    %445 = vmatprep.subr.mxu0 0.0
    %446 = vmatpush1.msra.mxu0 0.0
    %447 = vmatprep.subr.mxu0 0.0
    %448 = vmatpush1.msra.mxu0 0.0
    %449 = vmatprep.subr.mxu0 0.0
    %450 = vmatpush1.msra.mxu0 0.0
    %451 = vmatprep.subr.mxu0 0.0
    %452 = vmatpush1.msra.mxu0 0.0
    %453 = vmatprep.subr.mxu0 0.0
    %454 = vmatpush1.msra.mxu0 0.0
    %455 = vmatprep.subr.mxu0 0.0
    %456 = vmatpush1.msra.mxu0 0.0
    %457 = vmatprep.subr.mxu0 0.0
    %458 = vmatpush1.msra.mxu0 0.0
    %459 = vmatprep.subr.mxu0 0.0
    %460 = vmatpush1.msra.mxu0 0.0
    %461 = vmatprep.subr.mxu0 0.0
    %462 = vmatpush1.msra.mxu0 0.0
    %463 = vmatprep.subr.mxu0 0.0
    %464 = vmatpush1.msra.mxu0 0.0
    %465 = vmatprep.subr.mxu0 0.0
    %466 = vmatpush1.msra.mxu0 0.0
    %467 = vmatprep.subr.mxu0 0.0
    %468 = vmatpush1.msra.mxu0 0.0
    %469 = vmatprep.subr.mxu0 0.0
    %470 = vmatpush1.msra.mxu0 0.0
    %471 = vmatprep.mubr.f32.mxu0 0.0
    %472 = vmatmul.mubr.f32.gmra.mrb[0].mxu0 %v405
    %v473 = vpop.f32.mrb[0].mxu0
    %v474 = vadd.f32 0.0, %v473
    %v475 = vpop.f32.mrb[0].mxu0
    %476 = vdwg.mxu0
    %v477 = vrot.slane %v335, 7
    %v478 = vsel %vm403, %v477, %v334
    %v479 = vsel %vm40, %v478, 0
    %481 = vmatprep.subr.mxu0 0.0
    %482 = vmatpush1.msra.mxu0 %v336
    %483 = vmatprep.subr.mxu0 0.0
    %484 = vmatpush1.msra.mxu0 %v337
    %485 = vmatprep.subr.mxu0 0.0
    %486 = vmatpush1.msra.mxu0 %v338
    %487 = vmatprep.subr.mxu0 0.0
    %488 = vmatpush1.msra.mxu0 %v339
    %489 = vmatprep.subr.mxu0 0.0
    %490 = vmatpush1.msra.mxu0 %v340
    %491 = vmatprep.subr.mxu0 0.0
    %492 = vmatpush1.msra.mxu0 %v341
    %493 = vmatprep.subr.mxu0 0.0
    %494 = vmatpush1.msra.mxu0 %v342
    %495 = vmatprep.subr.mxu0 0.0
    %496 = vmatpush1.msra.mxu0 %v343
    %497 = vmatprep.subr.mxu0 0.0
    %498 = vmatpush1.msra.mxu0 0.0
    %499 = vmatprep.subr.mxu0 0.0
    %500 = vmatpush1.msra.mxu0 0.0
    %501 = vmatprep.subr.mxu0 0.0
    %502 = vmatpush1.msra.mxu0 0.0
    %503 = vmatprep.subr.mxu0 0.0
    %504 = vmatpush1.msra.mxu0 0.0
    %505 = vmatprep.subr.mxu0 0.0
    %506 = vmatpush1.msra.mxu0 0.0
    %507 = vmatprep.subr.mxu0 0.0
    %508 = vmatpush1.msra.mxu0 0.0
    %509 = vmatprep.subr.mxu0 0.0
    %510 = vmatpush1.msra.mxu0 0.0
    %511 = vmatprep.subr.mxu0 0.0
    %512 = vmatpush1.msra.mxu0 0.0
    %513 = vmatprep.subr.mxu0 0.0
    %514 = vmatpush1.msra.mxu0 0.0
    %515 = vmatprep.subr.mxu0 0.0
    %516 = vmatpush1.msra.mxu0 0.0
    %517 = vmatprep.subr.mxu0 0.0
    %518 = vmatpush1.msra.mxu0 0.0
    %519 = vmatprep.subr.mxu0 0.0
    %520 = vmatpush1.msra.mxu0 0.0
    %521 = vmatprep.subr.mxu0 0.0
    %522 = vmatpush1.msra.mxu0 0.0
    %523 = vmatprep.subr.mxu0 0.0
    %524 = vmatpush1.msra.mxu0 0.0
    %525 = vmatprep.subr.mxu0 0.0
    %526 = vmatpush1.msra.mxu0 0.0
    %527 = vmatprep.subr.mxu0 0.0
    %528 = vmatpush1.msra.mxu0 0.0
    %529 = vmatprep.subr.mxu0 0.0
    %530 = vmatpush1.msra.mxu0 0.0
    %531 = vmatprep.subr.mxu0 0.0
    %532 = vmatpush1.msra.mxu0 0.0
    %533 = vmatprep.subr.mxu0 0.0
    %534 = vmatpush1.msra.mxu0 0.0
    %535 = vmatprep.subr.mxu0 0.0
    %536 = vmatpush1.msra.mxu0 0.0
    %537 = vmatprep.subr.mxu0 0.0
    %538 = vmatpush1.msra.mxu0 0.0
    %539 = vmatprep.subr.mxu0 0.0
    %540 = vmatpush1.msra.mxu0 0.0
    %541 = vmatprep.subr.mxu0 0.0
    %542 = vmatpush1.msra.mxu0 0.0
    %543 = vmatprep.subr.mxu0 0.0
    %544 = vmatpush1.msra.mxu0 0.0
    %545 = vmatprep.mubr.f32.mxu0 0.0
    %546 = vmatmul.mubr.f32.gmra.mrb[0].mxu0 %v479
    %v547 = vpop.f32.mrb[0].mxu0
    %v548 = vadd.f32 %v474, %v547
    %v549 = vpop.f32.mrb[0].mxu0
    %550 = vdwg.mxu0
    %v551 = vrot.slane %v334, 2
    %v552 = vrot.slane %v335, 1
    %v553 = vsel %vm403, %v552, %v551
    %v554 = vsel %vm40, %v553, 0
    %556 = vmatprep.subr.mxu0 0.0
    %557 = vmatpush1.msra.mxu0 %v352
    %558 = vmatprep.subr.mxu0 0.0
    %559 = vmatpush1.msra.mxu0 %v353
    %560 = vmatprep.subr.mxu0 0.0
    %561 = vmatpush1.msra.mxu0 %v354
    %562 = vmatprep.subr.mxu0 0.0
    %563 = vmatpush1.msra.mxu0 %v355
    %564 = vmatprep.subr.mxu0 0.0
    %565 = vmatpush1.msra.mxu0 %v356
    %566 = vmatprep.subr.mxu0 0.0
    %567 = vmatpush1.msra.mxu0 %v357
    %568 = vmatprep.subr.mxu0 0.0
    %569 = vmatpush1.msra.mxu0 %v358
    %570 = vmatprep.subr.mxu0 0.0
    %571 = vmatpush1.msra.mxu0 %v359
    %572 = vmatprep.subr.mxu0 0.0
    %573 = vmatpush1.msra.mxu0 0.0
    %574 = vmatprep.subr.mxu0 0.0
    %575 = vmatpush1.msra.mxu0 0.0
    %576 = vmatprep.subr.mxu0 0.0
    %577 = vmatpush1.msra.mxu0 0.0
    %578 = vmatprep.subr.mxu0 0.0
    %579 = vmatpush1.msra.mxu0 0.0
    %580 = vmatprep.subr.mxu0 0.0
    %581 = vmatpush1.msra.mxu0 0.0
    %582 = vmatprep.subr.mxu0 0.0
    %583 = vmatpush1.msra.mxu0 0.0
    %584 = vmatprep.subr.mxu0 0.0
    %585 = vmatpush1.msra.mxu0 0.0
    %586 = vmatprep.subr.mxu0 0.0
    %587 = vmatpush1.msra.mxu0 0.0
    %588 = vmatprep.subr.mxu0 0.0
    %589 = vmatpush1.msra.mxu0 0.0
    %590 = vmatprep.subr.mxu0 0.0
    %591 = vmatpush1.msra.mxu0 0.0
    %592 = vmatprep.subr.mxu0 0.0
    %593 = vmatpush1.msra.mxu0 0.0
    %594 = vmatprep.subr.mxu0 0.0
    %595 = vmatpush1.msra.mxu0 0.0
    %596 = vmatprep.subr.mxu0 0.0
    %597 = vmatpush1.msra.mxu0 0.0
    %598 = vmatprep.subr.mxu0 0.0
    %599 = vmatpush1.msra.mxu0 0.0
    %600 = vmatprep.subr.mxu0 0.0
    %601 = vmatpush1.msra.mxu0 0.0
    %602 = vmatprep.subr.mxu0 0.0
    %603 = vmatpush1.msra.mxu0 0.0
    %604 = vmatprep.subr.mxu0 0.0
    %605 = vmatpush1.msra.mxu0 0.0
    %606 = vmatprep.subr.mxu0 0.0
    %607 = vmatpush1.msra.mxu0 0.0
    %608 = vmatprep.subr.mxu0 0.0
    %609 = vmatpush1.msra.mxu0 0.0
    %610 = vmatprep.subr.mxu0 0.0
    %611 = vmatpush1.msra.mxu0 0.0
    %612 = vmatprep.subr.mxu0 0.0
    %613 = vmatpush1.msra.mxu0 0.0
    %614 = vmatprep.subr.mxu0 0.0
    %615 = vmatpush1.msra.mxu0 0.0
    %616 = vmatprep.subr.mxu0 0.0
    %617 = vmatpush1.msra.mxu0 0.0
    %618 = vmatprep.subr.mxu0 0.0
    %619 = vmatpush1.msra.mxu0 0.0
    %620 = vmatprep.mubr.f32.mxu0 0.0
    %621 = vmatmul.mubr.f32.gmra.mrb[0].mxu0 %v554
    %v622 = vpop.f32.mrb[0].mxu0
    %v623 = vadd.f32 0.0, %v622
    %v624 = vpop.f32.mrb[0].mxu0
    %625 = vdwg.mxu0
    %v626 = vadd.f32 %v548, %v623
    %v627 = vrot.slane %v334, 3
    %v628 = vrot.slane %v335, 2
    %v629 = vsel %vm403, %v628, %v627
    %v630 = vsel %vm40, %v629, 0
    %632 = vmatprep.subr.mxu0 0.0
    %633 = vmatpush1.msra.mxu0 %v360
    %634 = vmatprep.subr.mxu0 0.0
    %635 = vmatpush1.msra.mxu0 %v361
    %636 = vmatprep.subr.mxu0 0.0
    %637 = vmatpush1.msra.mxu0 %v362
    %638 = vmatprep.subr.mxu0 0.0
    %639 = vmatpush1.msra.mxu0 %v363
    %640 = vmatprep.subr.mxu0 0.0
    %641 = vmatpush1.msra.mxu0 %v364
    %642 = vmatprep.subr.mxu0 0.0
    %643 = vmatpush1.msra.mxu0 %v365
    %644 = vmatprep.subr.mxu0 0.0
    %645 = vmatpush1.msra.mxu0 %v366
    %646 = vmatprep.subr.mxu0 0.0
    %647 = vmatpush1.msra.mxu0 %v367
    %648 = vmatprep.subr.mxu0 0.0
    %649 = vmatpush1.msra.mxu0 0.0
    %650 = vmatprep.subr.mxu0 0.0
    %651 = vmatpush1.msra.mxu0 0.0
    %652 = vmatprep.subr.mxu0 0.0
    %653 = vmatpush1.msra.mxu0 0.0
    %654 = vmatprep.subr.mxu0 0.0
    %655 = vmatpush1.msra.mxu0 0.0
    %656 = vmatprep.subr.mxu0 0.0
    %657 = vmatpush1.msra.mxu0 0.0
    %658 = vmatprep.subr.mxu0 0.0
    %659 = vmatpush1.msra.mxu0 0.0
    %660 = vmatprep.subr.mxu0 0.0
    %661 = vmatpush1.msra.mxu0 0.0
    %662 = vmatprep.subr.mxu0 0.0
    %663 = vmatpush1.msra.mxu0 0.0
    %664 = vmatprep.subr.mxu0 0.0
    %665 = vmatpush1.msra.mxu0 0.0
    %666 = vmatprep.subr.mxu0 0.0
    %667 = vmatpush1.msra.mxu0 0.0
    %668 = vmatprep.subr.mxu0 0.0
    %669 = vmatpush1.msra.mxu0 0.0
    %670 = vmatprep.subr.mxu0 0.0
    %671 = vmatpush1.msra.mxu0 0.0
    %672 = vmatprep.subr.mxu0 0.0
    %673 = vmatpush1.msra.mxu0 0.0
    %674 = vmatprep.subr.mxu0 0.0
    %675 = vmatpush1.msra.mxu0 0.0
    %676 = vmatprep.subr.mxu0 0.0
    %677 = vmatpush1.msra.mxu0 0.0
    %678 = vmatprep.subr.mxu0 0.0
    %679 = vmatpush1.msra.mxu0 0.0
    %680 = vmatprep.subr.mxu0 0.0
    %681 = vmatpush1.msra.mxu0 0.0
    %682 = vmatprep.subr.mxu0 0.0
    %683 = vmatpush1.msra.mxu0 0.0
    %684 = vmatprep.subr.mxu0 0.0
    %685 = vmatpush1.msra.mxu0 0.0
    %686 = vmatprep.subr.mxu0 0.0
    %687 = vmatpush1.msra.mxu0 0.0
    %688 = vmatprep.subr.mxu0 0.0
    %689 = vmatpush1.msra.mxu0 0.0
    %690 = vmatprep.subr.mxu0 0.0
    %691 = vmatpush1.msra.mxu0 0.0
    %692 = vmatprep.subr.mxu0 0.0
    %693 = vmatpush1.msra.mxu0 0.0
    %694 = vmatprep.subr.mxu0 0.0
    %695 = vmatpush1.msra.mxu0 0.0
    %696 = vmatprep.mubr.f32.mxu0 0.0
    %697 = vmatmul.mubr.f32.gmra.mrb[0].mxu0 %v630
    %v698 = vpop.f32.mrb[0].mxu0
    %v699 = vadd.f32 0.0, %v698
    %v700 = vpop.f32.mrb[0].mxu0
    %701 = vdwg.mxu0
    %v702 = vadd.f32 %v626, %v699
    %v703 = vrot.slane %v334, 4
    %v704 = vrot.slane %v335, 3
    %v705 = vsel %vm403, %v704, %v703
    %v706 = vsel %vm40, %v705, 0
    %708 = vmatprep.subr.mxu0 0.0
    %709 = vmatpush1.msra.mxu0 %v368
    %710 = vmatprep.subr.mxu0 0.0
    %711 = vmatpush1.msra.mxu0 %v369
    %712 = vmatprep.subr.mxu0 0.0
    %713 = vmatpush1.msra.mxu0 %v370
    %714 = vmatprep.subr.mxu0 0.0
    %715 = vmatpush1.msra.mxu0 %v371
    %716 = vmatprep.subr.mxu0 0.0
    %717 = vmatpush1.msra.mxu0 %v372
    %718 = vmatprep.subr.mxu0 0.0
    %719 = vmatpush1.msra.mxu0 %v373
    %720 = vmatprep.subr.mxu0 0.0
    %721 = vmatpush1.msra.mxu0 %v374
    %722 = vmatprep.subr.mxu0 0.0
    %723 = vmatpush1.msra.mxu0 %v375
    %724 = vmatprep.subr.mxu0 0.0
    %725 = vmatpush1.msra.mxu0 0.0
    %726 = vmatprep.subr.mxu0 0.0
    %727 = vmatpush1.msra.mxu0 0.0
    %728 = vmatprep.subr.mxu0 0.0
    %729 = vmatpush1.msra.mxu0 0.0
    %730 = vmatprep.subr.mxu0 0.0
    %731 = vmatpush1.msra.mxu0 0.0
    %732 = vmatprep.subr.mxu0 0.0
    %733 = vmatpush1.msra.mxu0 0.0
    %734 = vmatprep.subr.mxu0 0.0
    %735 = vmatpush1.msra.mxu0 0.0
    %736 = vmatprep.subr.mxu0 0.0
    %737 = vmatpush1.msra.mxu0 0.0
    %738 = vmatprep.subr.mxu0 0.0
    %739 = vmatpush1.msra.mxu0 0.0
    %740 = vmatprep.subr.mxu0 0.0
    %741 = vmatpush1.msra.mxu0 0.0
    %742 = vmatprep.subr.mxu0 0.0
    %743 = vmatpush1.msra.mxu0 0.0
    %744 = vmatprep.subr.mxu0 0.0
    %745 = vmatpush1.msra.mxu0 0.0
    %746 = vmatprep.subr.mxu0 0.0
    %747 = vmatpush1.msra.mxu0 0.0
    %748 = vmatprep.subr.mxu0 0.0
    %749 = vmatpush1.msra.mxu0 0.0
    %750 = vmatprep.subr.mxu0 0.0
    %751 = vmatpush1.msra.mxu0 0.0
    %752 = vmatprep.subr.mxu0 0.0
    %753 = vmatpush1.msra.mxu0 0.0
    %754 = vmatprep.subr.mxu0 0.0
    %755 = vmatpush1.msra.mxu0 0.0
    %756 = vmatprep.subr.mxu0 0.0
    %757 = vmatpush1.msra.mxu0 0.0
    %758 = vmatprep.subr.mxu0 0.0
    %759 = vmatpush1.msra.mxu0 0.0
    %760 = vmatprep.subr.mxu0 0.0
    %761 = vmatpush1.msra.mxu0 0.0
    %762 = vmatprep.subr.mxu0 0.0
    %763 = vmatpush1.msra.mxu0 0.0
    %764 = vmatprep.subr.mxu0 0.0
    %765 = vmatpush1.msra.mxu0 0.0
    %766 = vmatprep.subr.mxu0 0.0
    %767 = vmatpush1.msra.mxu0 0.0
    %768 = vmatprep.subr.mxu0 0.0
    %769 = vmatpush1.msra.mxu0 0.0
    %770 = vmatprep.subr.mxu0 0.0
    %771 = vmatpush1.msra.mxu0 0.0
    %772 = vmatprep.mubr.f32.mxu0 0.0
    %773 = vmatmul.mubr.f32.gmra.mrb[0].mxu0 %v706
    %v774 = vpop.f32.mrb[0].mxu0
    %v775 = vadd.f32 0.0, %v774
    %v776 = vpop.f32.mrb[0].mxu0
    %777 = vdwg.mxu0
    %v778 = vadd.f32 %v702, %v775
    %v779 = vrot.slane %v334, 5
    %v780 = vrot.slane %v335, 4
    %v781 = vsel %vm403, %v780, %v779
    %v782 = vsel %vm40, %v781, 0
    %784 = vmatprep.subr.mxu0 0.0
    %785 = vmatpush1.msra.mxu0 %v376
    %786 = vmatprep.subr.mxu0 0.0
    %787 = vmatpush1.msra.mxu0 %v377
    %788 = vmatprep.subr.mxu0 0.0
    %789 = vmatpush1.msra.mxu0 %v378
    %790 = vmatprep.subr.mxu0 0.0
    %791 = vmatpush1.msra.mxu0 %v379
    %792 = vmatprep.subr.mxu0 0.0
    %793 = vmatpush1.msra.mxu0 %v380
    %794 = vmatprep.subr.mxu0 0.0
    %795 = vmatpush1.msra.mxu0 %v381
    %796 = vmatprep.subr.mxu0 0.0
    %797 = vmatpush1.msra.mxu0 %v382
    %798 = vmatprep.subr.mxu0 0.0
    %799 = vmatpush1.msra.mxu0 %v383
    %800 = vmatprep.subr.mxu0 0.0
    %801 = vmatpush1.msra.mxu0 0.0
    %802 = vmatprep.subr.mxu0 0.0
    %803 = vmatpush1.msra.mxu0 0.0
    %804 = vmatprep.subr.mxu0 0.0
    %805 = vmatpush1.msra.mxu0 0.0
    %806 = vmatprep.subr.mxu0 0.0
    %807 = vmatpush1.msra.mxu0 0.0
    %808 = vmatprep.subr.mxu0 0.0
    %809 = vmatpush1.msra.mxu0 0.0
    %810 = vmatprep.subr.mxu0 0.0
    %811 = vmatpush1.msra.mxu0 0.0
    %812 = vmatprep.subr.mxu0 0.0
    %813 = vmatpush1.msra.mxu0 0.0
    %814 = vmatprep.subr.mxu0 0.0
    %815 = vmatpush1.msra.mxu0 0.0
    %816 = vmatprep.subr.mxu0 0.0
    %817 = vmatpush1.msra.mxu0 0.0
    %818 = vmatprep.subr.mxu0 0.0
    %819 = vmatpush1.msra.mxu0 0.0
    %820 = vmatprep.subr.mxu0 0.0
    %821 = vmatpush1.msra.mxu0 0.0
    %822 = vmatprep.subr.mxu0 0.0
    %823 = vmatpush1.msra.mxu0 0.0
    %824 = vmatprep.subr.mxu0 0.0
    %825 = vmatpush1.msra.mxu0 0.0
    %826 = vmatprep.subr.mxu0 0.0
    %827 = vmatpush1.msra.mxu0 0.0
    %828 = vmatprep.subr.mxu0 0.0
    %829 = vmatpush1.msra.mxu0 0.0
    %830 = vmatprep.subr.mxu0 0.0
    %831 = vmatpush1.msra.mxu0 0.0
    %832 = vmatprep.subr.mxu0 0.0
    %833 = vmatpush1.msra.mxu0 0.0
    %834 = vmatprep.subr.mxu0 0.0
    %835 = vmatpush1.msra.mxu0 0.0
    %836 = vmatprep.subr.mxu0 0.0
    %837 = vmatpush1.msra.mxu0 0.0
    %838 = vmatprep.subr.mxu0 0.0
    %839 = vmatpush1.msra.mxu0 0.0
    %840 = vmatprep.subr.mxu0 0.0
    %841 = vmatpush1.msra.mxu0 0.0
    %842 = vmatprep.subr.mxu0 0.0
    %843 = vmatpush1.msra.mxu0 0.0
    %844 = vmatprep.subr.mxu0 0.0
    %845 = vmatpush1.msra.mxu0 0.0
    %846 = vmatprep.subr.mxu0 0.0
    %847 = vmatpush1.msra.mxu0 0.0
    %848 = vmatprep.mubr.f32.mxu0 0.0
    %849 = vmatmul.mubr.f32.gmra.mrb[0].mxu0 %v782
    %v850 = vpop.f32.mrb[0].mxu0
    %v851 = vadd.f32 0.0, %v850
    %v852 = vpop.f32.mrb[0].mxu0
    %853 = vdwg.mxu0
    %v854 = vadd.f32 %v778, %v851
    %v855 = vrot.slane %v334, 6
    %v856 = vrot.slane %v335, 5
    %v857 = vsel %vm403, %v856, %v855
    %v858 = vsel %vm40, %v857, 0
    %860 = vmatprep.subr.mxu0 0.0
    %861 = vmatpush1.msra.mxu0 %v384
    %862 = vmatprep.subr.mxu0 0.0
    %863 = vmatpush1.msra.mxu0 %v385
    %864 = vmatprep.subr.mxu0 0.0
    %865 = vmatpush1.msra.mxu0 %v386
    %866 = vmatprep.subr.mxu0 0.0
    %867 = vmatpush1.msra.mxu0 %v387
    %868 = vmatprep.subr.mxu0 0.0
    %869 = vmatpush1.msra.mxu0 %v388
    %870 = vmatprep.subr.mxu0 0.0
    %871 = vmatpush1.msra.mxu0 %v389
    %872 = vmatprep.subr.mxu0 0.0
    %873 = vmatpush1.msra.mxu0 %v390
    %874 = vmatprep.subr.mxu0 0.0
    %875 = vmatpush1.msra.mxu0 %v391
    %876 = vmatprep.subr.mxu0 0.0
    %877 = vmatpush1.msra.mxu0 0.0
    %878 = vmatprep.subr.mxu0 0.0
    %879 = vmatpush1.msra.mxu0 0.0
    %880 = vmatprep.subr.mxu0 0.0
    %881 = vmatpush1.msra.mxu0 0.0
    %882 = vmatprep.subr.mxu0 0.0
    %883 = vmatpush1.msra.mxu0 0.0
    %884 = vmatprep.subr.mxu0 0.0
    %885 = vmatpush1.msra.mxu0 0.0
    %886 = vmatprep.subr.mxu0 0.0
    %887 = vmatpush1.msra.mxu0 0.0
    %888 = vmatprep.subr.mxu0 0.0
    %889 = vmatpush1.msra.mxu0 0.0
    %890 = vmatprep.subr.mxu0 0.0
    %891 = vmatpush1.msra.mxu0 0.0
    %892 = vmatprep.subr.mxu0 0.0
    %893 = vmatpush1.msra.mxu0 0.0
    %894 = vmatprep.subr.mxu0 0.0
    %895 = vmatpush1.msra.mxu0 0.0
    %896 = vmatprep.subr.mxu0 0.0
    %897 = vmatpush1.msra.mxu0 0.0
    %898 = vmatprep.subr.mxu0 0.0
    %899 = vmatpush1.msra.mxu0 0.0
    %900 = vmatprep.subr.mxu0 0.0
    %901 = vmatpush1.msra.mxu0 0.0
    %902 = vmatprep.subr.mxu0 0.0
    %903 = vmatpush1.msra.mxu0 0.0
    %904 = vmatprep.subr.mxu0 0.0
    %905 = vmatpush1.msra.mxu0 0.0
    %906 = vmatprep.subr.mxu0 0.0
    %907 = vmatpush1.msra.mxu0 0.0
    %908 = vmatprep.subr.mxu0 0.0
    %909 = vmatpush1.msra.mxu0 0.0
    %910 = vmatprep.subr.mxu0 0.0
    %911 = vmatpush1.msra.mxu0 0.0
    %912 = vmatprep.subr.mxu0 0.0
    %913 = vmatpush1.msra.mxu0 0.0
    %914 = vmatprep.subr.mxu0 0.0
    %915 = vmatpush1.msra.mxu0 0.0
    %916 = vmatprep.subr.mxu0 0.0
    %917 = vmatpush1.msra.mxu0 0.0
    %918 = vmatprep.subr.mxu0 0.0
    %919 = vmatpush1.msra.mxu0 0.0
    %920 = vmatprep.subr.mxu0 0.0
    %921 = vmatpush1.msra.mxu0 0.0
    %922 = vmatprep.subr.mxu0 0.0
    %923 = vmatpush1.msra.mxu0 0.0
    %924 = vmatprep.mubr.f32.mxu0 0.0
    %925 = vmatmul.mubr.f32.gmra.mrb[0].mxu0 %v858
    %v926 = vpop.f32.mrb[0].mxu0
    %v927 = vadd.f32 0.0, %v926
    %v928 = vpop.f32.mrb[0].mxu0
    %929 = vdwg.mxu0
    %v930 = vadd.f32 %v854, %v927
    %v931 = vrot.slane %v334, 7
    %v932 = vrot.slane %v335, 6
    %v933 = vsel %vm403, %v932, %v931
    %v934 = vsel %vm40, %v933, 0
    %936 = vmatprep.subr.mxu0 0.0
    %937 = vmatpush1.msra.mxu0 %v392
    %938 = vmatprep.subr.mxu0 0.0
    %939 = vmatpush1.msra.mxu0 %v393
    %940 = vmatprep.subr.mxu0 0.0
    %941 = vmatpush1.msra.mxu0 %v394
    %942 = vmatprep.subr.mxu0 0.0
    %943 = vmatpush1.msra.mxu0 %v395
    %944 = vmatprep.subr.mxu0 0.0
    %945 = vmatpush1.msra.mxu0 %v396
    %946 = vmatprep.subr.mxu0 0.0
    %947 = vmatpush1.msra.mxu0 %v397
    %948 = vmatprep.subr.mxu0 0.0
    %949 = vmatpush1.msra.mxu0 %v398
    %950 = vmatprep.subr.mxu0 0.0
    %951 = vmatpush1.msra.mxu0 %v399
    %952 = vmatprep.subr.mxu0 0.0
    %953 = vmatpush1.msra.mxu0 0.0
    %954 = vmatprep.subr.mxu0 0.0
    %955 = vmatpush1.msra.mxu0 0.0
    %956 = vmatprep.subr.mxu0 0.0
    %957 = vmatpush1.msra.mxu0 0.0
    %958 = vmatprep.subr.mxu0 0.0
    %959 = vmatpush1.msra.mxu0 0.0
    %960 = vmatprep.subr.mxu0 0.0
    %961 = vmatpush1.msra.mxu0 0.0
    %962 = vmatprep.subr.mxu0 0.0
    %963 = vmatpush1.msra.mxu0 0.0
    %964 = vmatprep.subr.mxu0 0.0
    %965 = vmatpush1.msra.mxu0 0.0
    %966 = vmatprep.subr.mxu0 0.0
    %967 = vmatpush1.msra.mxu0 0.0
    %968 = vmatprep.subr.mxu0 0.0
    %969 = vmatpush1.msra.mxu0 0.0
    %970 = vmatprep.subr.mxu0 0.0
    %971 = vmatpush1.msra.mxu0 0.0
    %972 = vmatprep.subr.mxu0 0.0
    %973 = vmatpush1.msra.mxu0 0.0
    %974 = vmatprep.subr.mxu0 0.0
    %975 = vmatpush1.msra.mxu0 0.0
    %976 = vmatprep.subr.mxu0 0.0
    %977 = vmatpush1.msra.mxu0 0.0
    %978 = vmatprep.subr.mxu0 0.0
    %979 = vmatpush1.msra.mxu0 0.0
    %980 = vmatprep.subr.mxu0 0.0
    %981 = vmatpush1.msra.mxu0 0.0
    %982 = vmatprep.subr.mxu0 0.0
    %983 = vmatpush1.msra.mxu0 0.0
    %984 = vmatprep.subr.mxu0 0.0
    %985 = vmatpush1.msra.mxu0 0.0
    %986 = vmatprep.subr.mxu0 0.0
    %987 = vmatpush1.msra.mxu0 0.0
    %988 = vmatprep.subr.mxu0 0.0
    %989 = vmatpush1.msra.mxu0 0.0
    %990 = vmatprep.subr.mxu0 0.0
    %991 = vmatpush1.msra.mxu0 0.0
    %992 = vmatprep.subr.mxu0 0.0
    %993 = vmatpush1.msra.mxu0 0.0
    %994 = vmatprep.subr.mxu0 0.0
    %995 = vmatpush1.msra.mxu0 0.0
    %996 = vmatprep.subr.mxu0 0.0
    %997 = vmatpush1.msra.mxu0 0.0
    %998 = vmatprep.subr.mxu0 0.0
    %999 = vmatpush1.msra.mxu0 0.0
    %1000 = vmatprep.mubr.f32.mxu0 0.0
    %1001 = vmatmul.mubr.f32.gmra.mrb[0].mxu0 %v934
    %v1002 = vpop.f32.mrb[0].mxu0
    %v1003 = vadd.f32 0.0, %v1002
    %v1004 = vpop.f32.mrb[0].mxu0
    %1005 = vdwg.mxu0
    %v1006 = vadd.f32 %v930, %v1003
    %vm1007 = vcmask 74752
    %1008 = vst.msk [vmem:[#allocation2] sm:$0x3] %vm1007, %v1006
    // Predicated region
    $region22: #{tpu_custom_call.1} parent=1 // pred_check
      _
    $region23: #{tpu_custom_call.1} parent=1 // pred_check_branch
      %1010 = sbr.rel (0) target = $region25
    $region24: #{tpu_custom_call.1} parent=1 // pred_region
      %s1012 = ssub.s32 32, 32
      %1013 = vsyncadd [#allocation3], %s1012
      %s1015 = sshll.u32 [#allocation2], 4
      %s1016 = int_to_ptr.vmem [resolvable:$true] %s1015
      %1018 = dma.vmem_to_hbm [thread:$0]  %s1016, 32, %s5, [#allocation3]
    $region25: #{tpu_custom_call.1} parent=1 // pred_fallthru
      _
    // Predicated region
    $region26: #{tpu_custom_call.1} parent=1 // pred_check
      _
    $region27: #{tpu_custom_call.1} parent=1 // pred_check_branch
      %1020 = sbr.rel (0) target = $region29
    $region28: #{tpu_custom_call.1} parent=1 // pred_region
      %s1022 = ssub.s32 256, 256
      %1023 = vsyncadd [#allocation5], %s1022
      %s1024 = sshll.u32 [#allocation4], 4
      %s1025 = int_to_ptr.vmem [resolvable:$true] %s1024
      %1030 = dma.vmem_to_hbm [thread:$0]  %s1025, 256, %s6, [#allocation5], 128, 128, 8
    $region29: #{tpu_custom_call.1} parent=1 // pred_fallthru
      _
    // Predicated region
    $region30: #{tpu_custom_call.1} parent=1 // pred_check
      _
    $region31: #{tpu_custom_call.1} parent=1 // pred_check_branch
      %1032 = sbr.rel (0) target = $region33
    $region32: #{tpu_custom_call.1} parent=1 // pred_region
      %s1034 = ssub.s32 16, 16
      %1035 = vsyncadd [#allocation5], %s1034
      %s1037 = sshll.u32 [#allocation6], 4
      %s1038 = int_to_ptr.vmem [resolvable:$true] %s1037
      %1040 = dma.vmem_to_hbm [thread:$0]  %s1038, 16, %s7, [#allocation5]
    $region33: #{tpu_custom_call.1} parent=1 // pred_fallthru
      _
    // Predicated region
    $region34: #{tpu_custom_call.1} parent=1 // pred_check
      _
    $region35: #{tpu_custom_call.1} parent=1 // pred_check_branch
      %1042 = sbr.rel (0) target = $region37
    $region36: #{tpu_custom_call.1} parent=1 // pred_region
      %1043 = dma.done [#allocation3], 32
    $region37: #{tpu_custom_call.1} parent=1 // pred_fallthru
      _
    // Predicated region
    $region38: #{tpu_custom_call.1} parent=1 // pred_check
      _
    $region39: #{tpu_custom_call.1} parent=1 // pred_check_branch
      %1045 = sbr.rel (0) target = $region41
    $region40: #{tpu_custom_call.1} parent=1 // pred_region
      %1046 = dma.done [#allocation5], 256
    $region41: #{tpu_custom_call.1} parent=1 // pred_fallthru
      _
    // Predicated region
    $region42: #{tpu_custom_call.1} parent=1 // pred_check
      _
    $region43: #{tpu_custom_call.1} parent=1 // pred_check_branch
      %1048 = sbr.rel (0) target = $region45
    $region44: #{tpu_custom_call.1} parent=1 // pred_region
      %1049 = dma.done [#allocation5], 16
    $region45: #{tpu_custom_call.1} parent=1 // pred_fallthru
      _
    %1050 = vsyncpa [#allocation3], 1
    %1051 = vsyncpa [#allocation5], 1

</llo_original>
